<compile_context>
chip_gen: v7x
topology: tpu7x:2x2x1
jax: 0.10.0
libtpu: 0.0.40
codegen_flags: <defaults>
</compile_context>

<pallas_src>
import jax
import jax.numpy as jnp
import numpy as np
from jax import lax
from jax.experimental import pallas as pl
from jax.experimental.pallas import tpu as pltpu


def _bilstm_kernel(x_ref, wcat_ref, bcat_ref, whf_ref, out_ref, pre_scr):
    """One-shot BiLSTM hot path.

    x_ref:    (T*B, C)   time-major input rows, row t*B+b = x[b, :, t]
    wcat_ref: (C, 8H)    [W_ih_fwd | W_ih_bwd], gate order [i, f, o, g]
    bcat_ref: (1, 8H)    [(b_ih+b_hh)_fwd | (b_ih+b_hh)_bwd], same gate order
    whf_ref:  (H, 4H)    forward-direction W_hh, gate order [i, f, o, g]
    out_ref:  (B, H)     h_fwd[T-1] + h_bwd @ (t = T-1)
    pre_scr:  (T*B, 4H)  VMEM scratch holding the forward pre-gates
    """
    TB, C = x_ref.shape
    B, H = out_ref.shape
    T = TB // B
    H3 = 3 * H
    H4 = 4 * H

    # ---- Hoisted input projection: one matmul for all timesteps, both dirs ----
    pre = jnp.dot(x_ref[...], wcat_ref[...],
                  preferred_element_type=jnp.float32) + bcat_ref[...]
    pre_scr[...] = pre[:, :H4]               # forward pre-gates, every t
    g_bwd = pre[(T - 1) * B:TB, H4:]         # reverse pre-gates at t = T-1

    w_hf = whf_ref[...]

    def cell_from_gates(gates, c):
        # gate order [i, f, o, g]: one sigmoid pass over 3H lanes, one tanh pass
        sig = jax.nn.sigmoid(gates[:, :H3])
        i_g = sig[:, 0:H]
        f_g = sig[:, H:2 * H]
        o_g = sig[:, 2 * H:H3]
        g_g = jnp.tanh(gates[:, H3:H4])
        c_new = f_g * c + i_g * g_g
        h_new = o_g * jnp.tanh(c_new)
        return h_new, c_new

    h0 = jnp.zeros((B, H), jnp.float32)
    c0 = jnp.zeros((B, H), jnp.float32)

    # ---- Forward recurrence: only h @ W_hh remains on the serial path ----
    def fwd_body(t, carry):
        h, c = carry
        gates = pre_scr[pl.ds(t * B, B), :] + jnp.dot(
            h, w_hf, preferred_element_type=jnp.float32)
        return cell_from_gates(gates, c)

    h_fwd, _ = lax.fori_loop(0, T, fwd_body, (h0, c0), unroll=True)

    # ---- Reverse direction at the last output step: single step, zero state.
    # h0 == 0, so h0 @ W_hh_reverse is identically zero and was never computed.
    h_bwd, _ = cell_from_gates(g_bwd, c0)

    out_ref[...] = (h_fwd + h_bwd).astype(out_ref.dtype)


def _reorder_gates(a):
    """Permute PyTorch LSTM gate blocks [i, f, g, o] -> [i, f, o, g] (axis 0)."""
    i, f, g, o = jnp.split(a, 4, axis=0)
    return jnp.concatenate([i, f, o, g], axis=0)


def bilstm_block(x_bct, params):
    """Pallas implementation of BiLSTMBlock.forward.

    x_bct: (B, C, T) float32, the layout the PyTorch module receives.
    Returns: (B, H) float32.
    """
    (w_ih_f, w_hh_f, b_ih_f, b_hh_f,
     w_ih_b, w_hh_b, b_ih_b, b_hh_b) = params
    del w_hh_b  # reverse-direction hidden matmul is dead (zero initial state)
    B, C, T = x_bct.shape
    H = w_hh_f.shape[1]

    # Layout / parameter packing in plain JAX (one-time, outside the hot path).
    x2d = jnp.transpose(x_bct, (2, 0, 1)).reshape(T * B, C)            # (T*B, C)
    wcat = jnp.concatenate(
        [_reorder_gates(w_ih_f).T, _reorder_gates(w_ih_b).T], axis=1)  # (C, 8H)
    bcat = jnp.concatenate(
        [_reorder_gates(b_ih_f + b_hh_f),
         _reorder_gates(b_ih_b + b_hh_b)])[None, :]                    # (1, 8H)
    whf = _reorder_gates(w_hh_f).T                                     # (H, 4H)

    def full_spec(a):
        nd = a.ndim
        return pl.BlockSpec(a.shape, lambda *_: (0,) * nd)

    out = pl.pallas_call(
        _bilstm_kernel,
        out_shape=jax.ShapeDtypeStruct((B, H), jnp.float32),
        in_specs=[full_spec(x2d), full_spec(wcat), full_spec(bcat), full_spec(whf)],
        out_specs=pl.BlockSpec((B, H), lambda *_: (0, 0)),
        scratch_shapes=[pltpu.VMEM((T * B, 4 * H), jnp.float32)],
    )(x2d, wcat, bcat, whf)
    return out


def bilstm_ref(x_bct, params):
    """Pure-JAX reference: full bidirectional LSTM, sum halves, take last step."""
    (w_ih_f, w_hh_f, b_ih_f, b_hh_f,
     w_ih_b, w_hh_b, b_ih_b, b_hh_b) = params
    x = jnp.transpose(x_bct, (0, 2, 1))  # (B, T, C), like PyTorch's permute
    H = w_hh_f.shape[1]

    def run(x_btc, w_ih, w_hh, b_ih, b_hh):
        Bsz = x_btc.shape[0]

        def step(carry, x_t):
            h, c = carry
            gates = x_t @ w_ih.T + h @ w_hh.T + b_ih + b_hh
            i = jax.nn.sigmoid(gates[:, 0 * H:1 * H])
            f = jax.nn.sigmoid(gates[:, 1 * H:2 * H])
            g = jnp.tanh(gates[:, 2 * H:3 * H])
            o = jax.nn.sigmoid(gates[:, 3 * H:4 * H])
            c = f * c + i * g
            h = o * jnp.tanh(c)
            return (h, c), h

        h0 = jnp.zeros((Bsz, H), jnp.float32)
        _, hs = lax.scan(step, (h0, h0), jnp.transpose(x_btc, (1, 0, 2)))
        return jnp.transpose(hs, (1, 0, 2))  # (B, T, H)

    out_f = run(x, w_ih_f, w_hh_f, b_ih_f, b_hh_f)
    out_b = run(x[:, ::-1, :], w_ih_b, w_hh_b, b_ih_b, b_hh_b)[:, ::-1, :]
    out = out_f + out_b
    return out[:, -1, :]


if __name__ == "__main__":
    B, C, T, H = 2, 16, 8, 32  # batch, input_size, seq_len, embed_dim

    key = jax.random.PRNGKey(0)
    ks = jax.random.split(key, 9)
    bound = 1.0 / np.sqrt(H)

    def u(k, shape):
        return jax.random.uniform(k, shape, jnp.float32, -bound, bound)

    # Deterministic synthetic parameters with PyTorch nn.LSTM shapes
    # (weight_ih_l0, weight_hh_l0, bias_ih_l0, bias_hh_l0, then *_reverse).
    params = (
        u(ks[0], (4 * H, C)), u(ks[1], (4 * H, H)), u(ks[2], (4 * H,)), u(ks[3], (4 * H,)),
        u(ks[4], (4 * H, C)), u(ks[5], (4 * H, H)), u(ks[6], (4 * H,)), u(ks[7], (4 * H,)),
    )
    x = jax.random.normal(ks[8], (B, C, T), jnp.float32)  # module input: (B, C, T)

    out = jax.block_until_ready(bilstm_block(x, params))
    ref = jax.block_until_ready(bilstm_ref(x, params))

    assert out.shape == (B, H), out.shape
    np.testing.assert_allclose(np.asarray(out), np.asarray(ref), rtol=1e-5, atol=1e-5)
    print("KERNEL_OK")
</pallas_src>

<mosaic_0001>
module attributes {stable_mosaic.version = 11 : i64} {
  func.func @_bilstm_kernel(%arg0: memref<16x16xf32, #tpu.memory_space<vmem>>, %arg1: memref<16x256xf32, #tpu.memory_space<vmem>>, %arg2: memref<1x256xf32, #tpu.memory_space<vmem>>, %arg3: memref<32x128xf32, #tpu.memory_space<vmem>>, %arg4: memref<2x32xf32, #tpu.memory_space<vmem>>, %arg5: memref<16x128xf32, #tpu.memory_space<vmem>>) attributes {dimension_semantics = [], scalar_prefetch = 0 : i64, scratch_operands = 1 : i64, tpu.core_type = #tpu.core_type<tc>} {
    %c0 = arith.constant 0 : index
    %c0_0 = arith.constant 0 : index
    %0 = vector.load %arg0[%c0, %c0_0] : memref<16x16xf32, #tpu.memory_space<vmem>>, vector<16x16xf32>
    %c0_1 = arith.constant 0 : index
    %c0_2 = arith.constant 0 : index
    %1 = vector.load %arg1[%c0_1, %c0_2] : memref<16x256xf32, #tpu.memory_space<vmem>>, vector<16x256xf32>
    %cst = arith.constant dense<0.000000e+00> : vector<16x256xf32>
    %2 = tpu.matmul %0, %1, %cst {dimension_numbers = #tpu.dot_dimension_numbers<[1], [0], [0], [1], [0, 0, 1, 1], [], []>} : vector<16x16xf32>, vector<16x256xf32>, vector<16x256xf32> -> vector<16x256xf32>
    %c0_3 = arith.constant 0 : index
    %c0_4 = arith.constant 0 : index
    %3 = vector.load %arg2[%c0_3, %c0_4] : memref<1x256xf32, #tpu.memory_space<vmem>>, vector<1x256xf32>
    %4 = vector.broadcast %3 : vector<1x256xf32> to vector<16x256xf32>
    %5 = arith.addf %2, %4 : vector<16x256xf32>
    %6 = vector.extract_strided_slice %5 {offsets = [0, 0], sizes = [16, 128], strides = [1, 1]} : vector<16x256xf32> to vector<16x128xf32>
    %c0_5 = arith.constant 0 : index
    %c0_6 = arith.constant 0 : index
    %7 = vector.load %arg5[%c0_5, %c0_6] : memref<16x128xf32, #tpu.memory_space<vmem>>, vector<16x128xf32>
    tpu.vector_store %arg5[%c0_5, %c0_6], %6 {strides = array<i32>} : memref<16x128xf32, #tpu.memory_space<vmem>>, vector<16x128xf32>,
    %8 = vector.extract_strided_slice %5 {offsets = [14, 128], sizes = [2, 128], strides = [1, 1]} : vector<16x256xf32> to vector<2x128xf32>
    %c0_7 = arith.constant 0 : index
    %c0_8 = arith.constant 0 : index
    %9 = vector.load %arg3[%c0_7, %c0_8] : memref<32x128xf32, #tpu.memory_space<vmem>>, vector<32x128xf32>
    %cst_9 = arith.constant 0.000000e+00 : f32
    %10 = vector.broadcast %cst_9 : f32 to vector<2x32xf32>
    %cst_10 = arith.constant 0.000000e+00 : f32
    %11 = vector.broadcast %cst_10 : f32 to vector<2x32xf32>
    %c0_i32 = arith.constant 0 : i32
    %c2_i32 = arith.constant 2 : i32
    %12 = arith.muli %c0_i32, %c2_i32 : i32
    %13 = arith.index_cast %12 : i32 to index
    %c0_11 = arith.constant 0 : index
    %14 = vector.load %arg5[%13, %c0_11] : memref<16x128xf32, #tpu.memory_space<vmem>>, vector<2x128xf32>
    %cst_12 = arith.constant dense<0.000000e+00> : vector<2x128xf32>
    %15 = tpu.matmul %10, %9, %cst_12 {dimension_numbers = #tpu.dot_dimension_numbers<[1], [0], [0], [1], [0, 0, 1, 1], [], []>} : vector<2x32xf32>, vector<32x128xf32>, vector<2x128xf32> -> vector<2x128xf32>
    %16 = arith.addf %14, %15 : vector<2x128xf32>
    %17 = vector.extract_strided_slice %16 {offsets = [0, 0], sizes = [2, 96], strides = [1, 1]} : vector<2x128xf32> to vector<2x96xf32>
    %18 = arith.negf %17 : vector<2x96xf32>
    %19 = math.exp %18 : vector<2x96xf32>
    %cst_13 = arith.constant 1.000000e+00 : f32
    %20 = vector.broadcast %cst_13 : f32 to vector<2x96xf32>
    %21 = arith.addf %20, %19 : vector<2x96xf32>
    %22 = arith.divf %20, %21 : vector<2x96xf32>
    %23 = vector.extract_strided_slice %22 {offsets = [0, 0], sizes = [2, 32], strides = [1, 1]} : vector<2x96xf32> to vector<2x32xf32>
    %24 = vector.extract_strided_slice %22 {offsets = [0, 32], sizes = [2, 32], strides = [1, 1]} : vector<2x96xf32> to vector<2x32xf32>
    %25 = vector.extract_strided_slice %22 {offsets = [0, 64], sizes = [2, 32], strides = [1, 1]} : vector<2x96xf32> to vector<2x32xf32>
    %26 = vector.extract_strided_slice %16 {offsets = [0, 96], sizes = [2, 32], strides = [1, 1]} : vector<2x128xf32> to vector<2x32xf32>
    %27 = math.tanh %26 : vector<2x32xf32>
    %28 = arith.mulf %24, %11 : vector<2x32xf32>
    %29 = arith.mulf %23, %27 : vector<2x32xf32>
    %30 = arith.addf %28, %29 : vector<2x32xf32>
    %31 = math.tanh %30 : vector<2x32xf32>
    %32 = arith.mulf %25, %31 : vector<2x32xf32>
    %c1_i32 = arith.constant 1 : i32
    %c2_i32_14 = arith.constant 2 : i32
    %33 = arith.muli %c1_i32, %c2_i32_14 : i32
    %34 = arith.index_cast %33 : i32 to index
    %c0_15 = arith.constant 0 : index
    %35 = vector.load %arg5[%34, %c0_15] : memref<16x128xf32, #tpu.memory_space<vmem>>, vector<2x128xf32>
    %cst_16 = arith.constant dense<0.000000e+00> : vector<2x128xf32>
    %36 = tpu.matmul %32, %9, %cst_16 {dimension_numbers = #tpu.dot_dimension_numbers<[1], [0], [0], [1], [0, 0, 1, 1], [], []>} : vector<2x32xf32>, vector<32x128xf32>, vector<2x128xf32> -> vector<2x128xf32>
    %37 = arith.addf %35, %36 : vector<2x128xf32>
    %38 = vector.extract_strided_slice %37 {offsets = [0, 0], sizes = [2, 96], strides = [1, 1]} : vector<2x128xf32> to vector<2x96xf32>
    %39 = arith.negf %38 : vector<2x96xf32>
    %40 = math.exp %39 : vector<2x96xf32>
    %cst_17 = arith.constant 1.000000e+00 : f32
    %41 = vector.broadcast %cst_17 : f32 to vector<2x96xf32>
    %42 = arith.addf %41, %40 : vector<2x96xf32>
    %43 = arith.divf %41, %42 : vector<2x96xf32>
    %44 = vector.extract_strided_slice %43 {offsets = [0, 0], sizes = [2, 32], strides = [1, 1]} : vector<2x96xf32> to vector<2x32xf32>
    %45 = vector.extract_strided_slice %43 {offsets = [0, 32], sizes = [2, 32], strides = [1, 1]} : vector<2x96xf32> to vector<2x32xf32>
    %46 = vector.extract_strided_slice %43 {offsets = [0, 64], sizes = [2, 32], strides = [1, 1]} : vector<2x96xf32> to vector<2x32xf32>
    %47 = vector.extract_strided_slice %37 {offsets = [0, 96], sizes = [2, 32], strides = [1, 1]} : vector<2x128xf32> to vector<2x32xf32>
    %48 = math.tanh %47 : vector<2x32xf32>
    %49 = arith.mulf %45, %30 : vector<2x32xf32>
    %50 = arith.mulf %44, %48 : vector<2x32xf32>
    %51 = arith.addf %49, %50 : vector<2x32xf32>
    %52 = math.tanh %51 : vector<2x32xf32>
    %53 = arith.mulf %46, %52 : vector<2x32xf32>
    %c2_i32_18 = arith.constant 2 : i32
    %c2_i32_19 = arith.constant 2 : i32
    %54 = arith.muli %c2_i32_18, %c2_i32_19 : i32
    %55 = arith.index_cast %54 : i32 to index
    %c0_20 = arith.constant 0 : index
    %56 = vector.load %arg5[%55, %c0_20] : memref<16x128xf32, #tpu.memory_space<vmem>>, vector<2x128xf32>
    %cst_21 = arith.constant dense<0.000000e+00> : vector<2x128xf32>
    %57 = tpu.matmul %53, %9, %cst_21 {dimension_numbers = #tpu.dot_dimension_numbers<[1], [0], [0], [1], [0, 0, 1, 1], [], []>} : vector<2x32xf32>, vector<32x128xf32>, vector<2x128xf32> -> vector<2x128xf32>
    %58 = arith.addf %56, %57 : vector<2x128xf32>
    %59 = vector.extract_strided_slice %58 {offsets = [0, 0], sizes = [2, 96], strides = [1, 1]} : vector<2x128xf32> to vector<2x96xf32>
    %60 = arith.negf %59 : vector<2x96xf32>
    %61 = math.exp %60 : vector<2x96xf32>
    %cst_22 = arith.constant 1.000000e+00 : f32
    %62 = vector.broadcast %cst_22 : f32 to vector<2x96xf32>
    %63 = arith.addf %62, %61 : vector<2x96xf32>
    %64 = arith.divf %62, %63 : vector<2x96xf32>
    %65 = vector.extract_strided_slice %64 {offsets = [0, 0], sizes = [2, 32], strides = [1, 1]} : vector<2x96xf32> to vector<2x32xf32>
    %66 = vector.extract_strided_slice %64 {offsets = [0, 32], sizes = [2, 32], strides = [1, 1]} : vector<2x96xf32> to vector<2x32xf32>
    %67 = vector.extract_strided_slice %64 {offsets = [0, 64], sizes = [2, 32], strides = [1, 1]} : vector<2x96xf32> to vector<2x32xf32>
    %68 = vector.extract_strided_slice %58 {offsets = [0, 96], sizes = [2, 32], strides = [1, 1]} : vector<2x128xf32> to vector<2x32xf32>
    %69 = math.tanh %68 : vector<2x32xf32>
    %70 = arith.mulf %66, %51 : vector<2x32xf32>
    %71 = arith.mulf %65, %69 : vector<2x32xf32>
    %72 = arith.addf %70, %71 : vector<2x32xf32>
    %73 = math.tanh %72 : vector<2x32xf32>
    %74 = arith.mulf %67, %73 : vector<2x32xf32>
    %c3_i32 = arith.constant 3 : i32
    %c2_i32_23 = arith.constant 2 : i32
    %75 = arith.muli %c3_i32, %c2_i32_23 : i32
    %76 = arith.index_cast %75 : i32 to index
    %c0_24 = arith.constant 0 : index
    %77 = vector.load %arg5[%76, %c0_24] : memref<16x128xf32, #tpu.memory_space<vmem>>, vector<2x128xf32>
    %cst_25 = arith.constant dense<0.000000e+00> : vector<2x128xf32>
    %78 = tpu.matmul %74, %9, %cst_25 {dimension_numbers = #tpu.dot_dimension_numbers<[1], [0], [0], [1], [0, 0, 1, 1], [], []>} : vector<2x32xf32>, vector<32x128xf32>, vector<2x128xf32> -> vector<2x128xf32>
    %79 = arith.addf %77, %78 : vector<2x128xf32>
    %80 = vector.extract_strided_slice %79 {offsets = [0, 0], sizes = [2, 96], strides = [1, 1]} : vector<2x128xf32> to vector<2x96xf32>
    %81 = arith.negf %80 : vector<2x96xf32>
    %82 = math.exp %81 : vector<2x96xf32>
    %cst_26 = arith.constant 1.000000e+00 : f32
    %83 = vector.broadcast %cst_26 : f32 to vector<2x96xf32>
    %84 = arith.addf %83, %82 : vector<2x96xf32>
    %85 = arith.divf %83, %84 : vector<2x96xf32>
    %86 = vector.extract_strided_slice %85 {offsets = [0, 0], sizes = [2, 32], strides = [1, 1]} : vector<2x96xf32> to vector<2x32xf32>
    %87 = vector.extract_strided_slice %85 {offsets = [0, 32], sizes = [2, 32], strides = [1, 1]} : vector<2x96xf32> to vector<2x32xf32>
    %88 = vector.extract_strided_slice %85 {offsets = [0, 64], sizes = [2, 32], strides = [1, 1]} : vector<2x96xf32> to vector<2x32xf32>
    %89 = vector.extract_strided_slice %79 {offsets = [0, 96], sizes = [2, 32], strides = [1, 1]} : vector<2x128xf32> to vector<2x32xf32>
    %90 = math.tanh %89 : vector<2x32xf32>
    %91 = arith.mulf %87, %72 : vector<2x32xf32>
    %92 = arith.mulf %86, %90 : vector<2x32xf32>
    %93 = arith.addf %91, %92 : vector<2x32xf32>
    %94 = math.tanh %93 : vector<2x32xf32>
    %95 = arith.mulf %88, %94 : vector<2x32xf32>
    %c4_i32 = arith.constant 4 : i32
    %c2_i32_27 = arith.constant 2 : i32
    %96 = arith.muli %c4_i32, %c2_i32_27 : i32
    %97 = arith.index_cast %96 : i32 to index
    %c0_28 = arith.constant 0 : index
    %98 = vector.load %arg5[%97, %c0_28] : memref<16x128xf32, #tpu.memory_space<vmem>>, vector<2x128xf32>
    %cst_29 = arith.constant dense<0.000000e+00> : vector<2x128xf32>
    %99 = tpu.matmul %95, %9, %cst_29 {dimension_numbers = #tpu.dot_dimension_numbers<[1], [0], [0], [1], [0, 0, 1, 1], [], []>} : vector<2x32xf32>, vector<32x128xf32>, vector<2x128xf32> -> vector<2x128xf32>
    %100 = arith.addf %98, %99 : vector<2x128xf32>
    %101 = vector.extract_strided_slice %100 {offsets = [0, 0], sizes = [2, 96], strides = [1, 1]} : vector<2x128xf32> to vector<2x96xf32>
    %102 = arith.negf %101 : vector<2x96xf32>
    %103 = math.exp %102 : vector<2x96xf32>
    %cst_30 = arith.constant 1.000000e+00 : f32
    %104 = vector.broadcast %cst_30 : f32 to vector<2x96xf32>
    %105 = arith.addf %104, %103 : vector<2x96xf32>
    %106 = arith.divf %104, %105 : vector<2x96xf32>
    %107 = vector.extract_strided_slice %106 {offsets = [0, 0], sizes = [2, 32], strides = [1, 1]} : vector<2x96xf32> to vector<2x32xf32>
    %108 = vector.extract_strided_slice %106 {offsets = [0, 32], sizes = [2, 32], strides = [1, 1]} : vector<2x96xf32> to vector<2x32xf32>
    %109 = vector.extract_strided_slice %106 {offsets = [0, 64], sizes = [2, 32], strides = [1, 1]} : vector<2x96xf32> to vector<2x32xf32>
    %110 = vector.extract_strided_slice %100 {offsets = [0, 96], sizes = [2, 32], strides = [1, 1]} : vector<2x128xf32> to vector<2x32xf32>
    %111 = math.tanh %110 : vector<2x32xf32>
    %112 = arith.mulf %108, %93 : vector<2x32xf32>
    %113 = arith.mulf %107, %111 : vector<2x32xf32>
    %114 = arith.addf %112, %113 : vector<2x32xf32>
    %115 = math.tanh %114 : vector<2x32xf32>
    %116 = arith.mulf %109, %115 : vector<2x32xf32>
    %c5_i32 = arith.constant 5 : i32
    %c2_i32_31 = arith.constant 2 : i32
    %117 = arith.muli %c5_i32, %c2_i32_31 : i32
    %118 = arith.index_cast %117 : i32 to index
    %c0_32 = arith.constant 0 : index
    %119 = vector.load %arg5[%118, %c0_32] : memref<16x128xf32, #tpu.memory_space<vmem>>, vector<2x128xf32>
    %cst_33 = arith.constant dense<0.000000e+00> : vector<2x128xf32>
    %120 = tpu.matmul %116, %9, %cst_33 {dimension_numbers = #tpu.dot_dimension_numbers<[1], [0], [0], [1], [0, 0, 1, 1], [], []>} : vector<2x32xf32>, vector<32x128xf32>, vector<2x128xf32> -> vector<2x128xf32>
    %121 = arith.addf %119, %120 : vector<2x128xf32>
    %122 = vector.extract_strided_slice %121 {offsets = [0, 0], sizes = [2, 96], strides = [1, 1]} : vector<2x128xf32> to vector<2x96xf32>
    %123 = arith.negf %122 : vector<2x96xf32>
    %124 = math.exp %123 : vector<2x96xf32>
    %cst_34 = arith.constant 1.000000e+00 : f32
    %125 = vector.broadcast %cst_34 : f32 to vector<2x96xf32>
    %126 = arith.addf %125, %124 : vector<2x96xf32>
    %127 = arith.divf %125, %126 : vector<2x96xf32>
    %128 = vector.extract_strided_slice %127 {offsets = [0, 0], sizes = [2, 32], strides = [1, 1]} : vector<2x96xf32> to vector<2x32xf32>
    %129 = vector.extract_strided_slice %127 {offsets = [0, 32], sizes = [2, 32], strides = [1, 1]} : vector<2x96xf32> to vector<2x32xf32>
    %130 = vector.extract_strided_slice %127 {offsets = [0, 64], sizes = [2, 32], strides = [1, 1]} : vector<2x96xf32> to vector<2x32xf32>
    %131 = vector.extract_strided_slice %121 {offsets = [0, 96], sizes = [2, 32], strides = [1, 1]} : vector<2x128xf32> to vector<2x32xf32>
    %132 = math.tanh %131 : vector<2x32xf32>
    %133 = arith.mulf %129, %114 : vector<2x32xf32>
    %134 = arith.mulf %128, %132 : vector<2x32xf32>
    %135 = arith.addf %133, %134 : vector<2x32xf32>
    %136 = math.tanh %135 : vector<2x32xf32>
    %137 = arith.mulf %130, %136 : vector<2x32xf32>
    %c6_i32 = arith.constant 6 : i32
    %c2_i32_35 = arith.constant 2 : i32
    %138 = arith.muli %c6_i32, %c2_i32_35 : i32
    %139 = arith.index_cast %138 : i32 to index
    %c0_36 = arith.constant 0 : index
    %140 = vector.load %arg5[%139, %c0_36] : memref<16x128xf32, #tpu.memory_space<vmem>>, vector<2x128xf32>
    %cst_37 = arith.constant dense<0.000000e+00> : vector<2x128xf32>
    %141 = tpu.matmul %137, %9, %cst_37 {dimension_numbers = #tpu.dot_dimension_numbers<[1], [0], [0], [1], [0, 0, 1, 1], [], []>} : vector<2x32xf32>, vector<32x128xf32>, vector<2x128xf32> -> vector<2x128xf32>
    %142 = arith.addf %140, %141 : vector<2x128xf32>
    %143 = vector.extract_strided_slice %142 {offsets = [0, 0], sizes = [2, 96], strides = [1, 1]} : vector<2x128xf32> to vector<2x96xf32>
    %144 = arith.negf %143 : vector<2x96xf32>
    %145 = math.exp %144 : vector<2x96xf32>
    %cst_38 = arith.constant 1.000000e+00 : f32
    %146 = vector.broadcast %cst_38 : f32 to vector<2x96xf32>
    %147 = arith.addf %146, %145 : vector<2x96xf32>
    %148 = arith.divf %146, %147 : vector<2x96xf32>
    %149 = vector.extract_strided_slice %148 {offsets = [0, 0], sizes = [2, 32], strides = [1, 1]} : vector<2x96xf32> to vector<2x32xf32>
    %150 = vector.extract_strided_slice %148 {offsets = [0, 32], sizes = [2, 32], strides = [1, 1]} : vector<2x96xf32> to vector<2x32xf32>
    %151 = vector.extract_strided_slice %148 {offsets = [0, 64], sizes = [2, 32], strides = [1, 1]} : vector<2x96xf32> to vector<2x32xf32>
    %152 = vector.extract_strided_slice %142 {offsets = [0, 96], sizes = [2, 32], strides = [1, 1]} : vector<2x128xf32> to vector<2x32xf32>
    %153 = math.tanh %152 : vector<2x32xf32>
    %154 = arith.mulf %150, %135 : vector<2x32xf32>
    %155 = arith.mulf %149, %153 : vector<2x32xf32>
    %156 = arith.addf %154, %155 : vector<2x32xf32>
    %157 = math.tanh %156 : vector<2x32xf32>
    %158 = arith.mulf %151, %157 : vector<2x32xf32>
    %c7_i32 = arith.constant 7 : i32
    %c2_i32_39 = arith.constant 2 : i32
    %159 = arith.muli %c7_i32, %c2_i32_39 : i32
    %160 = arith.index_cast %159 : i32 to index
    %c0_40 = arith.constant 0 : index
    %161 = vector.load %arg5[%160, %c0_40] : memref<16x128xf32, #tpu.memory_space<vmem>>, vector<2x128xf32>
    %cst_41 = arith.constant dense<0.000000e+00> : vector<2x128xf32>
    %162 = tpu.matmul %158, %9, %cst_41 {dimension_numbers = #tpu.dot_dimension_numbers<[1], [0], [0], [1], [0, 0, 1, 1], [], []>} : vector<2x32xf32>, vector<32x128xf32>, vector<2x128xf32> -> vector<2x128xf32>
    %163 = arith.addf %161, %162 : vector<2x128xf32>
    %164 = vector.extract_strided_slice %163 {offsets = [0, 0], sizes = [2, 96], strides = [1, 1]} : vector<2x128xf32> to vector<2x96xf32>
    %165 = arith.negf %164 : vector<2x96xf32>
    %166 = math.exp %165 : vector<2x96xf32>
    %cst_42 = arith.constant 1.000000e+00 : f32
    %167 = vector.broadcast %cst_42 : f32 to vector<2x96xf32>
    %168 = arith.addf %167, %166 : vector<2x96xf32>
    %169 = arith.divf %167, %168 : vector<2x96xf32>
    %170 = vector.extract_strided_slice %169 {offsets = [0, 0], sizes = [2, 32], strides = [1, 1]} : vector<2x96xf32> to vector<2x32xf32>
    %171 = vector.extract_strided_slice %169 {offsets = [0, 32], sizes = [2, 32], strides = [1, 1]} : vector<2x96xf32> to vector<2x32xf32>
    %172 = vector.extract_strided_slice %169 {offsets = [0, 64], sizes = [2, 32], strides = [1, 1]} : vector<2x96xf32> to vector<2x32xf32>
    %173 = vector.extract_strided_slice %163 {offsets = [0, 96], sizes = [2, 32], strides = [1, 1]} : vector<2x128xf32> to vector<2x32xf32>
    %174 = math.tanh %173 : vector<2x32xf32>
    %175 = arith.mulf %171, %156 : vector<2x32xf32>
    %176 = arith.mulf %170, %174 : vector<2x32xf32>
    %177 = arith.addf %175, %176 : vector<2x32xf32>
    %178 = math.tanh %177 : vector<2x32xf32>
    %179 = arith.mulf %172, %178 : vector<2x32xf32>
    %c8_i32 = arith.constant 8 : i32
    %180 = vector.extract_strided_slice %8 {offsets = [0, 0], sizes = [2, 96], strides = [1, 1]} : vector<2x128xf32> to vector<2x96xf32>
    %181 = arith.negf %180 : vector<2x96xf32>
    %182 = math.exp %181 : vector<2x96xf32>
    %cst_43 = arith.constant 1.000000e+00 : f32
    %183 = vector.broadcast %cst_43 : f32 to vector<2x96xf32>
    %184 = arith.addf %183, %182 : vector<2x96xf32>
    %185 = arith.divf %183, %184 : vector<2x96xf32>
    %186 = vector.extract_strided_slice %185 {offsets = [0, 0], sizes = [2, 32], strides = [1, 1]} : vector<2x96xf32> to vector<2x32xf32>
    %187 = vector.extract_strided_slice %185 {offsets = [0, 32], sizes = [2, 32], strides = [1, 1]} : vector<2x96xf32> to vector<2x32xf32>
    %188 = vector.extract_strided_slice %185 {offsets = [0, 64], sizes = [2, 32], strides = [1, 1]} : vector<2x96xf32> to vector<2x32xf32>
    %189 = vector.extract_strided_slice %8 {offsets = [0, 96], sizes = [2, 32], strides = [1, 1]} : vector<2x128xf32> to vector<2x32xf32>
    %190 = math.tanh %189 : vector<2x32xf32>
    %191 = arith.mulf %187, %11 : vector<2x32xf32>
    %192 = arith.mulf %186, %190 : vector<2x32xf32>
    %193 = arith.addf %191, %192 : vector<2x32xf32>
    %194 = math.tanh %193 : vector<2x32xf32>
    %195 = arith.mulf %188, %194 : vector<2x32xf32>
    %196 = arith.addf %179, %195 : vector<2x32xf32>
    %c0_44 = arith.constant 0 : index
    %c0_45 = arith.constant 0 : index
    %197 = vector.load %arg4[%c0_44, %c0_45] : memref<2x32xf32, #tpu.memory_space<vmem>>, vector<2x32xf32>
    tpu.vector_store %arg4[%c0_44, %c0_45], %196 {strides = array<i32>} : memref<2x32xf32, #tpu.memory_space<vmem>>, vector<2x32xf32>,
    return
  }
}

</mosaic_0001>

<llo_original>
// kernel: tpu_custom_call.1
$region0: #{tpu_custom_call.1}
  #allocation0 [shape = 'u32[]', space=smem, size = 0x4, offset = 0x4, fixed_abs, tag = 'smem constant byte address 0x4 - core index']
  #allocation1 [shape = 'u32[144,128]{1,0:T(1,128)}', space=vmem, size = 0x12000, scoped, tag = 'internal scratch']
  #allocation2 [shape = 'f32[16,128]{1,0:T(8,128)}', space=vmem, size = 0x2000, scoped, tag = 'scratch operand']
  %s0 = inlined_call_operand.hbm [shape: f32[16,16], index: 0, kind: input, shape index: {}]
  %s1 = inlined_call_operand.hbm [shape: f32[16,256], index: 1, kind: input, shape index: {}]
  %s2 = inlined_call_operand.vmem [shape: f32[1,256], index: 2, kind: input, shape index: {}]
  %s3 = inlined_call_operand.hbm [shape: f32[32,128], index: 3, kind: input, shape index: {}]
  %s4 = inlined_call_operand.hbm [shape: f32[2,32], index: 4, kind: output, shape index: {}]
  %s5 = sld [smem:[#allocation0]]
  $region38: #{tpu_custom_call.1} parent=0
    _
  %s7 = ssub.s32 1, %s5
  %s8 = scalar_select 0, %s7, %s5
  $region1: #{tpu_custom_call.1} parent=0
    #allocation3 [shape = 'u8[8192]{0}', space=vmem, size = 0x2000, scoped, tag = 'input window, operand 0, single buffered']
    #allocation4 [shape = 's32[1]{0}', space=sflag, size = 0x4, scoped, tag = 'scoped memory for tpu_custom_call.1']
    #allocation5 [shape = 's32[1]{0}', space=sflag, size = 0x4, scoped, tag = 'scoped memory for tpu_custom_call.1']
    #allocation6 [shape = 'u8[16384]{0}', space=vmem, size = 0x4000, scoped, tag = 'input window, operand 1, single buffered']
    #allocation7 [shape = 's32[1]{0}', space=sflag, size = 0x4, scoped, tag = 'scoped memory for tpu_custom_call.1']
    #allocation8 [shape = 'u8[16384]{0}', space=vmem, size = 0x4000, scoped, tag = 'input window, operand 3, single buffered']
    #allocation9 [shape = 'u8[1024]{0}', space=vmem, size = 0x400, scoped, tag = 'output window, operand 0, single buffered']
    %9 = vsyncpa [#allocation4], 0
    %10 = vsyncpa [#allocation7], 0
    %11 = vsyncpa [#allocation5], 0
    // Predicated region
    $region2: #{tpu_custom_call.1} parent=1 // pred_check
      _
    $region3: #{tpu_custom_call.1} parent=1 // pred_check_branch
      %13 = sbr.rel (0) target = $region5
    $region4: #{tpu_custom_call.1} parent=1 // pred_region
      %s15 = ssub.s32 256, 256
      %16 = vsyncadd [#allocation4], %s15
      %s17 = sshll.u32 [#allocation3], 4
      %s18 = int_to_ptr.vmem [resolvable:$true] %s17
      %23 = dma.hbm_to_vmem [thread:$0]  %s0, 256, %s18, [#allocation4], 128, 128, 8
    $region5: #{tpu_custom_call.1} parent=1 // pred_fallthru
      _
    // Predicated region
    $region6: #{tpu_custom_call.1} parent=1 // pred_check
      _
    $region7: #{tpu_custom_call.1} parent=1 // pred_check_branch
      %25 = sbr.rel (0) target = $region9
    $region8: #{tpu_custom_call.1} parent=1 // pred_region
      %s27 = ssub.s32 512, 512
      %28 = vsyncadd [#allocation7], %s27
      %s29 = sshll.u32 [#allocation6], 4
      %s30 = int_to_ptr.vmem [resolvable:$true] %s29
      %35 = dma.hbm_to_vmem [thread:$0]  %s1, 512, %s30, [#allocation7], 256, 256, 16
    $region9: #{tpu_custom_call.1} parent=1 // pred_fallthru
      _
    // Predicated region
    $region10: #{tpu_custom_call.1} parent=1 // pred_check
      _
    $region11: #{tpu_custom_call.1} parent=1 // pred_check_branch
      %37 = sbr.rel (0) target = $region13
    $region12: #{tpu_custom_call.1} parent=1 // pred_region
      _
    $region13: #{tpu_custom_call.1} parent=1 // pred_fallthru
      _
    // Predicated region
    $region14: #{tpu_custom_call.1} parent=1 // pred_check
      _
    $region15: #{tpu_custom_call.1} parent=1 // pred_check_branch
      %39 = sbr.rel (0) target = $region17
    $region16: #{tpu_custom_call.1} parent=1 // pred_region
      %s41 = ssub.s32 512, 512
      %42 = vsyncadd [#allocation7], %s41
      %s43 = sshll.u32 [#allocation8], 4
      %s44 = int_to_ptr.vmem [resolvable:$true] %s43
      %49 = dma.hbm_to_vmem [thread:$0]  %s3, 512, %s44, [#allocation7], 128, 128, 8
    $region17: #{tpu_custom_call.1} parent=1 // pred_fallthru
      _
    // Predicated region
    $region18: #{tpu_custom_call.1} parent=1 // pred_check
      _
    $region19: #{tpu_custom_call.1} parent=1 // pred_check_branch
      %51 = sbr.rel (0) target = $region21
    $region20: #{tpu_custom_call.1} parent=1 // pred_region
      %52 = dma.done [#allocation4], 256
    $region21: #{tpu_custom_call.1} parent=1 // pred_fallthru
      _
    // Predicated region
    $region22: #{tpu_custom_call.1} parent=1 // pred_check
      _
    $region23: #{tpu_custom_call.1} parent=1 // pred_check_branch
      %54 = sbr.rel (0) target = $region25
    $region24: #{tpu_custom_call.1} parent=1 // pred_region
      %55 = dma.done [#allocation7], 512
    $region25: #{tpu_custom_call.1} parent=1 // pred_fallthru
      _
    // Predicated region
    $region26: #{tpu_custom_call.1} parent=1 // pred_check
      _
    $region27: #{tpu_custom_call.1} parent=1 // pred_check_branch
      %57 = sbr.rel (0) target = $region29
    $region28: #{tpu_custom_call.1} parent=1 // pred_region
      %58 = dma.done [#allocation7], 512
    $region29: #{tpu_custom_call.1} parent=1 // pred_fallthru
      _
    %v59 = vld [vmem:[#allocation3] sm:$0xff]
    %v60 = vld [vmem:[#allocation3 + $0x8] sm:$0xff]
    %v61 = vld [vmem:[#allocation6] sm:$0xff]
    %v62 = vld [vmem:[#allocation6 + $0x8] sm:$0xff]
    %v63 = vld [vmem:[#allocation6 + $0x10] sm:$0xff]
    %v64 = vld [vmem:[#allocation6 + $0x18] sm:$0xff]
    %v65 = vld [vmem:[%s2] sm:$0x3]
    %v67 = vlaneseq
    %v68 = vshrl.u32 %v67, 7
    %v69 = vsub.s32 0, %v68
    %v70 = vrot.slane %v65, %v69
    %v71 = vlaneseq
    %v72 = vshrl.u32 %v71, 7
    %v73 = vsub.s32 1, %v72
    %v74 = vrot.slane %v65, %v73
    %vm77 = vcmask 130048
    %v79 = vsel %vm77, %v59, 0
    %v82 = vsel %vm77, %v60, 0
    %84 = vmatprep.subr.mxu0 %v62
    %85 = vmatpush1.msra.mxu0 %v61
    %86 = vmatprep.subr.mxu0 %v64
    %87 = vmatpush1.msra.mxu0 %v63
    %88 = vmatprep.subr.mxu0 0.0
    %89 = vmatpush1.msra.mxu0 0.0
    %90 = vmatprep.subr.mxu0 0.0
    %91 = vmatpush1.msra.mxu0 0.0
    %92 = vmatprep.subr.mxu0 0.0
    %93 = vmatpush1.msra.mxu0 0.0
    %94 = vmatprep.subr.mxu0 0.0
    %95 = vmatpush1.msra.mxu0 0.0
    %96 = vmatprep.subr.mxu0 0.0
    %97 = vmatpush1.msra.mxu0 0.0
    %98 = vmatprep.subr.mxu0 0.0
    %99 = vmatpush1.msra.mxu0 0.0
    %100 = vmatprep.subr.mxu0 0.0
    %101 = vmatpush1.msra.mxu0 0.0
    %102 = vmatprep.subr.mxu0 0.0
    %103 = vmatpush1.msra.mxu0 0.0
    %104 = vmatprep.subr.mxu0 0.0
    %105 = vmatpush1.msra.mxu0 0.0
    %106 = vmatprep.subr.mxu0 0.0
    %107 = vmatpush1.msra.mxu0 0.0
    %108 = vmatprep.subr.mxu0 0.0
    %109 = vmatpush1.msra.mxu0 0.0
    %110 = vmatprep.subr.mxu0 0.0
    %111 = vmatpush1.msra.mxu0 0.0
    %112 = vmatprep.subr.mxu0 0.0
    %113 = vmatpush1.msra.mxu0 0.0
    %114 = vmatprep.subr.mxu0 0.0
    %115 = vmatpush1.msra.mxu0 0.0
    %116 = vmatprep.subr.mxu0 0.0
    %117 = vmatpush1.msra.mxu0 0.0
    %118 = vmatprep.subr.mxu0 0.0
    %119 = vmatpush1.msra.mxu0 0.0
    %120 = vmatprep.subr.mxu0 0.0
    %121 = vmatpush1.msra.mxu0 0.0
    %122 = vmatprep.subr.mxu0 0.0
    %123 = vmatpush1.msra.mxu0 0.0
    %124 = vmatprep.subr.mxu0 0.0
    %125 = vmatpush1.msra.mxu0 0.0
    %126 = vmatprep.subr.mxu0 0.0
    %127 = vmatpush1.msra.mxu0 0.0
    %128 = vmatprep.subr.mxu0 0.0
    %129 = vmatpush1.msra.mxu0 0.0
    %130 = vmatprep.subr.mxu0 0.0
    %131 = vmatpush1.msra.mxu0 0.0
    %132 = vmatprep.subr.mxu0 0.0
    %133 = vmatpush1.msra.mxu0 0.0
    %134 = vmatprep.subr.mxu0 0.0
    %135 = vmatpush1.msra.mxu0 0.0
    %136 = vmatprep.subr.mxu0 0.0
    %137 = vmatpush1.msra.mxu0 0.0
    %138 = vmatprep.subr.mxu0 0.0
    %139 = vmatpush1.msra.mxu0 0.0
    %140 = vmatprep.subr.mxu0 0.0
    %141 = vmatpush1.msra.mxu0 0.0
    %142 = vmatprep.subr.mxu0 0.0
    %143 = vmatpush1.msra.mxu0 0.0
    %144 = vmatprep.subr.mxu0 0.0
    %145 = vmatpush1.msra.mxu0 0.0
    %146 = vmatprep.subr.mxu0 0.0
    %147 = vmatpush1.msra.mxu0 0.0
    %148 = vmatprep.mubr.f32.mxu0 0.0
    %149 = vmatmul.mubr.f32.gmra.mrb[0].mxu0 %v79
    %v150 = vpop.f32.mrb[0].mxu0
    %v151 = vadd.f32 %v70, %v150
    %v152 = vpop.f32.mrb[0].mxu0
    %153 = vmatprep.mubr.f32.mxu0 0.0
    %154 = vmatmul.mubr.f32.gmra.mrb[0].mxu0 %v82
    %v155 = vpop.f32.mrb[0].mxu0
    %v156 = vadd.f32 %v70, %v155
    %v157 = vpop.f32.mrb[0].mxu0
    %v158 = vadd.f32 %v74, %v157
    %159 = vdwg.mxu0
    %160 = vst [vmem:[#allocation2] sm:$0xff] %v151
    %161 = vst [vmem:[#allocation2 + $0x8] sm:$0xff] %v156
    %v162 = vld [vmem:[#allocation8] sm:$0xff]
    %v163 = vld [vmem:[#allocation8 + $0x8] sm:$0xff]
    %v164 = vld [vmem:[#allocation8 + $0x10] sm:$0xff]
    %v165 = vld [vmem:[#allocation8 + $0x18] sm:$0xff]
    %v166 = vld [vmem:[#allocation2] sm:$0x3]
    %vm167 = vcmask 261120
    %v169 = vsel %vm167, 0.0, 0
    %171 = vmatprep.subr.mxu0 0.0
    %172 = vmatpush1.msra.mxu0 %v162
    %173 = vmatprep.subr.mxu0 0.0
    %174 = vmatpush1.msra.mxu0 %v163
    %175 = vmatprep.subr.mxu0 0.0
    %176 = vmatpush1.msra.mxu0 %v164
    %177 = vmatprep.subr.mxu0 0.0
    %178 = vmatpush1.msra.mxu0 %v165
    %179 = vmatprep.subr.mxu0 0.0
    %180 = vmatpush1.msra.mxu0 0.0
    %181 = vmatprep.subr.mxu0 0.0
    %182 = vmatpush1.msra.mxu0 0.0
    %183 = vmatprep.subr.mxu0 0.0
    %184 = vmatpush1.msra.mxu0 0.0
    %185 = vmatprep.subr.mxu0 0.0
    %186 = vmatpush1.msra.mxu0 0.0
    %187 = vmatprep.subr.mxu0 0.0
    %188 = vmatpush1.msra.mxu0 0.0
    %189 = vmatprep.subr.mxu0 0.0
    %190 = vmatpush1.msra.mxu0 0.0
    %191 = vmatprep.subr.mxu0 0.0
    %192 = vmatpush1.msra.mxu0 0.0
    %193 = vmatprep.subr.mxu0 0.0
    %194 = vmatpush1.msra.mxu0 0.0
    %195 = vmatprep.subr.mxu0 0.0
    %196 = vmatpush1.msra.mxu0 0.0
    %197 = vmatprep.subr.mxu0 0.0
    %198 = vmatpush1.msra.mxu0 0.0
    %199 = vmatprep.subr.mxu0 0.0
    %200 = vmatpush1.msra.mxu0 0.0
    %201 = vmatprep.subr.mxu0 0.0
    %202 = vmatpush1.msra.mxu0 0.0
    %203 = vmatprep.subr.mxu0 0.0
    %204 = vmatpush1.msra.mxu0 0.0
    %205 = vmatprep.subr.mxu0 0.0
    %206 = vmatpush1.msra.mxu0 0.0
    %207 = vmatprep.subr.mxu0 0.0
    %208 = vmatpush1.msra.mxu0 0.0
    %209 = vmatprep.subr.mxu0 0.0
    %210 = vmatpush1.msra.mxu0 0.0
    %211 = vmatprep.subr.mxu0 0.0
    %212 = vmatpush1.msra.mxu0 0.0
    %213 = vmatprep.subr.mxu0 0.0
    %214 = vmatpush1.msra.mxu0 0.0
    %215 = vmatprep.subr.mxu0 0.0
    %216 = vmatpush1.msra.mxu0 0.0
    %217 = vmatprep.subr.mxu0 0.0
    %218 = vmatpush1.msra.mxu0 0.0
    %219 = vmatprep.subr.mxu0 0.0
    %220 = vmatpush1.msra.mxu0 0.0
    %221 = vmatprep.subr.mxu0 0.0
    %222 = vmatpush1.msra.mxu0 0.0
    %223 = vmatprep.subr.mxu0 0.0
    %224 = vmatpush1.msra.mxu0 0.0
    %225 = vmatprep.subr.mxu0 0.0
    %226 = vmatpush1.msra.mxu0 0.0
    %227 = vmatprep.subr.mxu0 0.0
    %228 = vmatpush1.msra.mxu0 0.0
    %229 = vmatprep.subr.mxu0 0.0
    %230 = vmatpush1.msra.mxu0 0.0
    %231 = vmatprep.subr.mxu0 0.0
    %232 = vmatpush1.msra.mxu0 0.0
    %233 = vmatprep.subr.mxu0 0.0
    %234 = vmatpush1.msra.mxu0 0.0
    %235 = vmatprep.mubr.f32.mxu0 0.0
    %236 = vmatmul.mubr.f32.gmra.mrb[0].mxu0 %v169
    %v237 = vpop.f32.mrb[0].mxu0
    %v238 = vadd.f32 0.0, %v237
    %v239 = vpop.f32.mrb[0].mxu0
    %240 = vdwg.mxu0
    %v241 = vadd.f32 %v166, %v238
    %v242 = vxor.u32 %v241, 2147483648
    %v243 = vmul.f32 %v242, 1.442695
    %v244 = vpow.pop %v243
    %v245 = vadd.f32 %v244, 1.0
    %v246 = vrcp.pop %v245
    %v247 = vmul.f32 1.0, %v246
    %v248 = vtanh.pop %v241
    %v249 = vmul.f32 %v247, 0.0
    %251 = vrot.lane.b32.xlu0 %v248, 32
    %v252 = vpop.permute.xlu0 %251
    %v254 = vmul.f32 %v247, %v252
    %256 = vrot.lane.b32.xlu0 %v254, 32
    %v257 = vpop.permute.xlu0 %256
    %v259 = vadd.f32 %v249, %v257
    %v260 = vtanh.pop %v259
    %262 = vrot.lane.b32.xlu0 %v260, 32
    %v263 = vpop.permute.xlu0 %262
    %v265 = vmul.f32 %v247, %v263
    %v266 = vld [vmem:[#allocation2 + $0x2] sm:$0x3]
    %268 = vrot.lane.b32.xlu0 %v265, 64
    %v269 = vpop.permute.xlu0 %268
    %v270 = vsel %vm167, %v269, 0
    %272 = vmatprep.subr.mxu0 0.0
    %273 = vmatpush1.msra.mxu0 %v162
    %274 = vmatprep.subr.mxu0 0.0
    %275 = vmatpush1.msra.mxu0 %v163
    %276 = vmatprep.subr.mxu0 0.0
    %277 = vmatpush1.msra.mxu0 %v164
    %278 = vmatprep.subr.mxu0 0.0
    %279 = vmatpush1.msra.mxu0 %v165
    %280 = vmatprep.subr.mxu0 0.0
    %281 = vmatpush1.msra.mxu0 0.0
    %282 = vmatprep.subr.mxu0 0.0
    %283 = vmatpush1.msra.mxu0 0.0
    %284 = vmatprep.subr.mxu0 0.0
    %285 = vmatpush1.msra.mxu0 0.0
    %286 = vmatprep.subr.mxu0 0.0
    %287 = vmatpush1.msra.mxu0 0.0
    %288 = vmatprep.subr.mxu0 0.0
    %289 = vmatpush1.msra.mxu0 0.0
    %290 = vmatprep.subr.mxu0 0.0
    %291 = vmatpush1.msra.mxu0 0.0
    %292 = vmatprep.subr.mxu0 0.0
    %293 = vmatpush1.msra.mxu0 0.0
    %294 = vmatprep.subr.mxu0 0.0
    %295 = vmatpush1.msra.mxu0 0.0
    %296 = vmatprep.subr.mxu0 0.0
    %297 = vmatpush1.msra.mxu0 0.0
    %298 = vmatprep.subr.mxu0 0.0
    %299 = vmatpush1.msra.mxu0 0.0
    %300 = vmatprep.subr.mxu0 0.0
    %301 = vmatpush1.msra.mxu0 0.0
    %302 = vmatprep.subr.mxu0 0.0
    %303 = vmatpush1.msra.mxu0 0.0
    %304 = vmatprep.subr.mxu0 0.0
    %305 = vmatpush1.msra.mxu0 0.0
    %306 = vmatprep.subr.mxu0 0.0
    %307 = vmatpush1.msra.mxu0 0.0
    %308 = vmatprep.subr.mxu0 0.0
    %309 = vmatpush1.msra.mxu0 0.0
    %310 = vmatprep.subr.mxu0 0.0
    %311 = vmatpush1.msra.mxu0 0.0
    %312 = vmatprep.subr.mxu0 0.0
    %313 = vmatpush1.msra.mxu0 0.0
    %314 = vmatprep.subr.mxu0 0.0
    %315 = vmatpush1.msra.mxu0 0.0
    %316 = vmatprep.subr.mxu0 0.0
    %317 = vmatpush1.msra.mxu0 0.0
    %318 = vmatprep.subr.mxu0 0.0
    %319 = vmatpush1.msra.mxu0 0.0
    %320 = vmatprep.subr.mxu0 0.0
    %321 = vmatpush1.msra.mxu0 0.0
    %322 = vmatprep.subr.mxu0 0.0
    %323 = vmatpush1.msra.mxu0 0.0
    %324 = vmatprep.subr.mxu0 0.0
    %325 = vmatpush1.msra.mxu0 0.0
    %326 = vmatprep.subr.mxu0 0.0
    %327 = vmatpush1.msra.mxu0 0.0
    %328 = vmatprep.subr.mxu0 0.0
    %329 = vmatpush1.msra.mxu0 0.0
    %330 = vmatprep.subr.mxu0 0.0
    %331 = vmatpush1.msra.mxu0 0.0
    %332 = vmatprep.subr.mxu0 0.0
    %333 = vmatpush1.msra.mxu0 0.0
    %334 = vmatprep.subr.mxu0 0.0
    %335 = vmatpush1.msra.mxu0 0.0
    %336 = vmatprep.mubr.f32.mxu0 0.0
    %337 = vmatmul.mubr.f32.gmra.mrb[0].mxu0 %v270
    %v338 = vpop.f32.mrb[0].mxu0
    %v339 = vadd.f32 0.0, %v338
    %v340 = vpop.f32.mrb[0].mxu0
    %341 = vdwg.mxu0
    %v342 = vadd.f32 %v266, %v339
    %v343 = vxor.u32 %v342, 2147483648
    %v344 = vmul.f32 %v343, 1.442695
    %v345 = vpow.pop %v344
    %v346 = vadd.f32 %v345, 1.0
    %v347 = vrcp.pop %v346
    %v348 = vmul.f32 1.0, %v347
    %v349 = vtanh.pop %v342
    %v350 = vmul.f32 %v348, %v259
    %352 = vrot.lane.b32.xlu0 %v349, 32
    %v353 = vpop.permute.xlu0 %352
    %v355 = vmul.f32 %v348, %v353
    %357 = vrot.lane.b32.xlu0 %v355, 32
    %v358 = vpop.permute.xlu0 %357
    %v360 = vadd.f32 %v350, %v358
    %v361 = vtanh.pop %v360
    %363 = vrot.lane.b32.xlu0 %v361, 32
    %v364 = vpop.permute.xlu0 %363
    %v366 = vmul.f32 %v348, %v364
    %v367 = vld [vmem:[#allocation2 + $0x4] sm:$0x3]
    %369 = vrot.lane.b32.xlu0 %v366, 64
    %v370 = vpop.permute.xlu0 %369
    %v371 = vsel %vm167, %v370, 0
    %373 = vmatprep.subr.mxu0 0.0
    %374 = vmatpush1.msra.mxu0 %v162
    %375 = vmatprep.subr.mxu0 0.0
    %376 = vmatpush1.msra.mxu0 %v163
    %377 = vmatprep.subr.mxu0 0.0
    %378 = vmatpush1.msra.mxu0 %v164
    %379 = vmatprep.subr.mxu0 0.0
    %380 = vmatpush1.msra.mxu0 %v165
    %381 = vmatprep.subr.mxu0 0.0
    %382 = vmatpush1.msra.mxu0 0.0
    %383 = vmatprep.subr.mxu0 0.0
    %384 = vmatpush1.msra.mxu0 0.0
    %385 = vmatprep.subr.mxu0 0.0
    %386 = vmatpush1.msra.mxu0 0.0
    %387 = vmatprep.subr.mxu0 0.0
    %388 = vmatpush1.msra.mxu0 0.0
    %389 = vmatprep.subr.mxu0 0.0
    %390 = vmatpush1.msra.mxu0 0.0
    %391 = vmatprep.subr.mxu0 0.0
    %392 = vmatpush1.msra.mxu0 0.0
    %393 = vmatprep.subr.mxu0 0.0
    %394 = vmatpush1.msra.mxu0 0.0
    %395 = vmatprep.subr.mxu0 0.0
    %396 = vmatpush1.msra.mxu0 0.0
    %397 = vmatprep.subr.mxu0 0.0
    %398 = vmatpush1.msra.mxu0 0.0
    %399 = vmatprep.subr.mxu0 0.0
    %400 = vmatpush1.msra.mxu0 0.0
    %401 = vmatprep.subr.mxu0 0.0
    %402 = vmatpush1.msra.mxu0 0.0
    %403 = vmatprep.subr.mxu0 0.0
    %404 = vmatpush1.msra.mxu0 0.0
    %405 = vmatprep.subr.mxu0 0.0
    %406 = vmatpush1.msra.mxu0 0.0
    %407 = vmatprep.subr.mxu0 0.0
    %408 = vmatpush1.msra.mxu0 0.0
    %409 = vmatprep.subr.mxu0 0.0
    %410 = vmatpush1.msra.mxu0 0.0
    %411 = vmatprep.subr.mxu0 0.0
    %412 = vmatpush1.msra.mxu0 0.0
    %413 = vmatprep.subr.mxu0 0.0
    %414 = vmatpush1.msra.mxu0 0.0
    %415 = vmatprep.subr.mxu0 0.0
    %416 = vmatpush1.msra.mxu0 0.0
    %417 = vmatprep.subr.mxu0 0.0
    %418 = vmatpush1.msra.mxu0 0.0
    %419 = vmatprep.subr.mxu0 0.0
    %420 = vmatpush1.msra.mxu0 0.0
    %421 = vmatprep.subr.mxu0 0.0
    %422 = vmatpush1.msra.mxu0 0.0
    %423 = vmatprep.subr.mxu0 0.0
    %424 = vmatpush1.msra.mxu0 0.0
    %425 = vmatprep.subr.mxu0 0.0
    %426 = vmatpush1.msra.mxu0 0.0
    %427 = vmatprep.subr.mxu0 0.0
    %428 = vmatpush1.msra.mxu0 0.0
    %429 = vmatprep.subr.mxu0 0.0
    %430 = vmatpush1.msra.mxu0 0.0
    %431 = vmatprep.subr.mxu0 0.0
    %432 = vmatpush1.msra.mxu0 0.0
    %433 = vmatprep.subr.mxu0 0.0
    %434 = vmatpush1.msra.mxu0 0.0
    %435 = vmatprep.subr.mxu0 0.0
    %436 = vmatpush1.msra.mxu0 0.0
    %437 = vmatprep.mubr.f32.mxu0 0.0
    %438 = vmatmul.mubr.f32.gmra.mrb[0].mxu0 %v371
    %v439 = vpop.f32.mrb[0].mxu0
    %v440 = vadd.f32 0.0, %v439
    %v441 = vpop.f32.mrb[0].mxu0
    %442 = vdwg.mxu0
    %v443 = vadd.f32 %v367, %v440
    %v444 = vxor.u32 %v443, 2147483648
    %v445 = vmul.f32 %v444, 1.442695
    %v446 = vpow.pop %v445
    %v447 = vadd.f32 %v446, 1.0
    %v448 = vrcp.pop %v447
    %v449 = vmul.f32 1.0, %v448
    %v450 = vtanh.pop %v443
    %v451 = vmul.f32 %v449, %v360
    %453 = vrot.lane.b32.xlu0 %v450, 32
    %v454 = vpop.permute.xlu0 %453
    %v456 = vmul.f32 %v449, %v454
    %458 = vrot.lane.b32.xlu0 %v456, 32
    %v459 = vpop.permute.xlu0 %458
    %v461 = vadd.f32 %v451, %v459
    %v462 = vtanh.pop %v461
    %464 = vrot.lane.b32.xlu0 %v462, 32
    %v465 = vpop.permute.xlu0 %464
    %v467 = vmul.f32 %v449, %v465
    %v468 = vld [vmem:[#allocation2 + $0x6] sm:$0x3]
    %470 = vrot.lane.b32.xlu0 %v467, 64
    %v471 = vpop.permute.xlu0 %470
    %v472 = vsel %vm167, %v471, 0
    %474 = vmatprep.subr.mxu0 0.0
    %475 = vmatpush1.msra.mxu0 %v162
    %476 = vmatprep.subr.mxu0 0.0
    %477 = vmatpush1.msra.mxu0 %v163
    %478 = vmatprep.subr.mxu0 0.0
    %479 = vmatpush1.msra.mxu0 %v164
    %480 = vmatprep.subr.mxu0 0.0
    %481 = vmatpush1.msra.mxu0 %v165
    %482 = vmatprep.subr.mxu0 0.0
    %483 = vmatpush1.msra.mxu0 0.0
    %484 = vmatprep.subr.mxu0 0.0
    %485 = vmatpush1.msra.mxu0 0.0
    %486 = vmatprep.subr.mxu0 0.0
    %487 = vmatpush1.msra.mxu0 0.0
    %488 = vmatprep.subr.mxu0 0.0
    %489 = vmatpush1.msra.mxu0 0.0
    %490 = vmatprep.subr.mxu0 0.0
    %491 = vmatpush1.msra.mxu0 0.0
    %492 = vmatprep.subr.mxu0 0.0
    %493 = vmatpush1.msra.mxu0 0.0
    %494 = vmatprep.subr.mxu0 0.0
    %495 = vmatpush1.msra.mxu0 0.0
    %496 = vmatprep.subr.mxu0 0.0
    %497 = vmatpush1.msra.mxu0 0.0
    %498 = vmatprep.subr.mxu0 0.0
    %499 = vmatpush1.msra.mxu0 0.0
    %500 = vmatprep.subr.mxu0 0.0
    %501 = vmatpush1.msra.mxu0 0.0
    %502 = vmatprep.subr.mxu0 0.0
    %503 = vmatpush1.msra.mxu0 0.0
    %504 = vmatprep.subr.mxu0 0.0
    %505 = vmatpush1.msra.mxu0 0.0
    %506 = vmatprep.subr.mxu0 0.0
    %507 = vmatpush1.msra.mxu0 0.0
    %508 = vmatprep.subr.mxu0 0.0
    %509 = vmatpush1.msra.mxu0 0.0
    %510 = vmatprep.subr.mxu0 0.0
    %511 = vmatpush1.msra.mxu0 0.0
    %512 = vmatprep.subr.mxu0 0.0
    %513 = vmatpush1.msra.mxu0 0.0
    %514 = vmatprep.subr.mxu0 0.0
    %515 = vmatpush1.msra.mxu0 0.0
    %516 = vmatprep.subr.mxu0 0.0
    %517 = vmatpush1.msra.mxu0 0.0
    %518 = vmatprep.subr.mxu0 0.0
    %519 = vmatpush1.msra.mxu0 0.0
    %520 = vmatprep.subr.mxu0 0.0
    %521 = vmatpush1.msra.mxu0 0.0
    %522 = vmatprep.subr.mxu0 0.0
    %523 = vmatpush1.msra.mxu0 0.0
    %524 = vmatprep.subr.mxu0 0.0
    %525 = vmatpush1.msra.mxu0 0.0
    %526 = vmatprep.subr.mxu0 0.0
    %527 = vmatpush1.msra.mxu0 0.0
    %528 = vmatprep.subr.mxu0 0.0
    %529 = vmatpush1.msra.mxu0 0.0
    %530 = vmatprep.subr.mxu0 0.0
    %531 = vmatpush1.msra.mxu0 0.0
    %532 = vmatprep.subr.mxu0 0.0
    %533 = vmatpush1.msra.mxu0 0.0
    %534 = vmatprep.subr.mxu0 0.0
    %535 = vmatpush1.msra.mxu0 0.0
    %536 = vmatprep.subr.mxu0 0.0
    %537 = vmatpush1.msra.mxu0 0.0
    %538 = vmatprep.mubr.f32.mxu0 0.0
    %539 = vmatmul.mubr.f32.gmra.mrb[0].mxu0 %v472
    %v540 = vpop.f32.mrb[0].mxu0
    %v541 = vadd.f32 0.0, %v540
    %v542 = vpop.f32.mrb[0].mxu0
    %543 = vdwg.mxu0
    %v544 = vadd.f32 %v468, %v541
    %v545 = vxor.u32 %v544, 2147483648
    %v546 = vmul.f32 %v545, 1.442695
    %v547 = vpow.pop %v546
    %v548 = vadd.f32 %v547, 1.0
    %v549 = vrcp.pop %v548
    %v550 = vmul.f32 1.0, %v549
    %v551 = vtanh.pop %v544
    %v552 = vmul.f32 %v550, %v461
    %554 = vrot.lane.b32.xlu0 %v551, 32
    %v555 = vpop.permute.xlu0 %554
    %v557 = vmul.f32 %v550, %v555
    %559 = vrot.lane.b32.xlu0 %v557, 32
    %v560 = vpop.permute.xlu0 %559
    %v562 = vadd.f32 %v552, %v560
    %v563 = vtanh.pop %v562
    %565 = vrot.lane.b32.xlu0 %v563, 32
    %v566 = vpop.permute.xlu0 %565
    %v568 = vmul.f32 %v550, %v566
    %v569 = vld [vmem:[#allocation2 + $0x8] sm:$0x3]
    %571 = vrot.lane.b32.xlu0 %v568, 64
    %v572 = vpop.permute.xlu0 %571
    %v573 = vsel %vm167, %v572, 0
    %575 = vmatprep.subr.mxu0 0.0
    %576 = vmatpush1.msra.mxu0 %v162
    %577 = vmatprep.subr.mxu0 0.0
    %578 = vmatpush1.msra.mxu0 %v163
    %579 = vmatprep.subr.mxu0 0.0
    %580 = vmatpush1.msra.mxu0 %v164
    %581 = vmatprep.subr.mxu0 0.0
    %582 = vmatpush1.msra.mxu0 %v165
    %583 = vmatprep.subr.mxu0 0.0
    %584 = vmatpush1.msra.mxu0 0.0
    %585 = vmatprep.subr.mxu0 0.0
    %586 = vmatpush1.msra.mxu0 0.0
    %587 = vmatprep.subr.mxu0 0.0
    %588 = vmatpush1.msra.mxu0 0.0
    %589 = vmatprep.subr.mxu0 0.0
    %590 = vmatpush1.msra.mxu0 0.0
    %591 = vmatprep.subr.mxu0 0.0
    %592 = vmatpush1.msra.mxu0 0.0
    %593 = vmatprep.subr.mxu0 0.0
    %594 = vmatpush1.msra.mxu0 0.0
    %595 = vmatprep.subr.mxu0 0.0
    %596 = vmatpush1.msra.mxu0 0.0
    %597 = vmatprep.subr.mxu0 0.0
    %598 = vmatpush1.msra.mxu0 0.0
    %599 = vmatprep.subr.mxu0 0.0
    %600 = vmatpush1.msra.mxu0 0.0
    %601 = vmatprep.subr.mxu0 0.0
    %602 = vmatpush1.msra.mxu0 0.0
    %603 = vmatprep.subr.mxu0 0.0
    %604 = vmatpush1.msra.mxu0 0.0
    %605 = vmatprep.subr.mxu0 0.0
    %606 = vmatpush1.msra.mxu0 0.0
    %607 = vmatprep.subr.mxu0 0.0
    %608 = vmatpush1.msra.mxu0 0.0
    %609 = vmatprep.subr.mxu0 0.0
    %610 = vmatpush1.msra.mxu0 0.0
    %611 = vmatprep.subr.mxu0 0.0
    %612 = vmatpush1.msra.mxu0 0.0
    %613 = vmatprep.subr.mxu0 0.0
    %614 = vmatpush1.msra.mxu0 0.0
    %615 = vmatprep.subr.mxu0 0.0
    %616 = vmatpush1.msra.mxu0 0.0
    %617 = vmatprep.subr.mxu0 0.0
    %618 = vmatpush1.msra.mxu0 0.0
    %619 = vmatprep.subr.mxu0 0.0
    %620 = vmatpush1.msra.mxu0 0.0
    %621 = vmatprep.subr.mxu0 0.0
    %622 = vmatpush1.msra.mxu0 0.0
    %623 = vmatprep.subr.mxu0 0.0
    %624 = vmatpush1.msra.mxu0 0.0
    %625 = vmatprep.subr.mxu0 0.0
    %626 = vmatpush1.msra.mxu0 0.0
    %627 = vmatprep.subr.mxu0 0.0
    %628 = vmatpush1.msra.mxu0 0.0
    %629 = vmatprep.subr.mxu0 0.0
    %630 = vmatpush1.msra.mxu0 0.0
    %631 = vmatprep.subr.mxu0 0.0
    %632 = vmatpush1.msra.mxu0 0.0
    %633 = vmatprep.subr.mxu0 0.0
    %634 = vmatpush1.msra.mxu0 0.0
    %635 = vmatprep.subr.mxu0 0.0
    %636 = vmatpush1.msra.mxu0 0.0
    %637 = vmatprep.subr.mxu0 0.0
    %638 = vmatpush1.msra.mxu0 0.0
    %639 = vmatprep.mubr.f32.mxu0 0.0
    %640 = vmatmul.mubr.f32.gmra.mrb[0].mxu0 %v573
    %v641 = vpop.f32.mrb[0].mxu0
    %v642 = vadd.f32 0.0, %v641
    %v643 = vpop.f32.mrb[0].mxu0
    %644 = vdwg.mxu0
    %v645 = vadd.f32 %v569, %v642
    %v646 = vxor.u32 %v645, 2147483648
    %v647 = vmul.f32 %v646, 1.442695
    %v648 = vpow.pop %v647
    %v649 = vadd.f32 %v648, 1.0
    %v650 = vrcp.pop %v649
    %v651 = vmul.f32 1.0, %v650
    %v652 = vtanh.pop %v645
    %v653 = vmul.f32 %v651, %v562
    %655 = vrot.lane.b32.xlu0 %v652, 32
    %v656 = vpop.permute.xlu0 %655
    %v658 = vmul.f32 %v651, %v656
    %660 = vrot.lane.b32.xlu0 %v658, 32
    %v661 = vpop.permute.xlu0 %660
    %v663 = vadd.f32 %v653, %v661
    %v664 = vtanh.pop %v663
    %666 = vrot.lane.b32.xlu0 %v664, 32
    %v667 = vpop.permute.xlu0 %666
    %v669 = vmul.f32 %v651, %v667
    %v670 = vld [vmem:[#allocation2 + $0xa] sm:$0x3]
    %672 = vrot.lane.b32.xlu0 %v669, 64
    %v673 = vpop.permute.xlu0 %672
    %v674 = vsel %vm167, %v673, 0
    %676 = vmatprep.subr.mxu0 0.0
    %677 = vmatpush1.msra.mxu0 %v162
    %678 = vmatprep.subr.mxu0 0.0
    %679 = vmatpush1.msra.mxu0 %v163
    %680 = vmatprep.subr.mxu0 0.0
    %681 = vmatpush1.msra.mxu0 %v164
    %682 = vmatprep.subr.mxu0 0.0
    %683 = vmatpush1.msra.mxu0 %v165
    %684 = vmatprep.subr.mxu0 0.0
    %685 = vmatpush1.msra.mxu0 0.0
    %686 = vmatprep.subr.mxu0 0.0
    %687 = vmatpush1.msra.mxu0 0.0
    %688 = vmatprep.subr.mxu0 0.0
    %689 = vmatpush1.msra.mxu0 0.0
    %690 = vmatprep.subr.mxu0 0.0
    %691 = vmatpush1.msra.mxu0 0.0
    %692 = vmatprep.subr.mxu0 0.0
    %693 = vmatpush1.msra.mxu0 0.0
    %694 = vmatprep.subr.mxu0 0.0
    %695 = vmatpush1.msra.mxu0 0.0
    %696 = vmatprep.subr.mxu0 0.0
    %697 = vmatpush1.msra.mxu0 0.0
    %698 = vmatprep.subr.mxu0 0.0
    %699 = vmatpush1.msra.mxu0 0.0
    %700 = vmatprep.subr.mxu0 0.0
    %701 = vmatpush1.msra.mxu0 0.0
    %702 = vmatprep.subr.mxu0 0.0
    %703 = vmatpush1.msra.mxu0 0.0
    %704 = vmatprep.subr.mxu0 0.0
    %705 = vmatpush1.msra.mxu0 0.0
    %706 = vmatprep.subr.mxu0 0.0
    %707 = vmatpush1.msra.mxu0 0.0
    %708 = vmatprep.subr.mxu0 0.0
    %709 = vmatpush1.msra.mxu0 0.0
    %710 = vmatprep.subr.mxu0 0.0
    %711 = vmatpush1.msra.mxu0 0.0
    %712 = vmatprep.subr.mxu0 0.0
    %713 = vmatpush1.msra.mxu0 0.0
    %714 = vmatprep.subr.mxu0 0.0
    %715 = vmatpush1.msra.mxu0 0.0
    %716 = vmatprep.subr.mxu0 0.0
    %717 = vmatpush1.msra.mxu0 0.0
    %718 = vmatprep.subr.mxu0 0.0
    %719 = vmatpush1.msra.mxu0 0.0
    %720 = vmatprep.subr.mxu0 0.0
    %721 = vmatpush1.msra.mxu0 0.0
    %722 = vmatprep.subr.mxu0 0.0
    %723 = vmatpush1.msra.mxu0 0.0
    %724 = vmatprep.subr.mxu0 0.0
    %725 = vmatpush1.msra.mxu0 0.0
    %726 = vmatprep.subr.mxu0 0.0
    %727 = vmatpush1.msra.mxu0 0.0
    %728 = vmatprep.subr.mxu0 0.0
    %729 = vmatpush1.msra.mxu0 0.0
    %730 = vmatprep.subr.mxu0 0.0
    %731 = vmatpush1.msra.mxu0 0.0
    %732 = vmatprep.subr.mxu0 0.0
    %733 = vmatpush1.msra.mxu0 0.0
    %734 = vmatprep.subr.mxu0 0.0
    %735 = vmatpush1.msra.mxu0 0.0
    %736 = vmatprep.subr.mxu0 0.0
    %737 = vmatpush1.msra.mxu0 0.0
    %738 = vmatprep.subr.mxu0 0.0
    %739 = vmatpush1.msra.mxu0 0.0
    %740 = vmatprep.mubr.f32.mxu0 0.0
    %741 = vmatmul.mubr.f32.gmra.mrb[0].mxu0 %v674
    %v742 = vpop.f32.mrb[0].mxu0
    %v743 = vadd.f32 0.0, %v742
    %v744 = vpop.f32.mrb[0].mxu0
    %745 = vdwg.mxu0
    %v746 = vadd.f32 %v670, %v743
    %v747 = vxor.u32 %v746, 2147483648
    %v748 = vmul.f32 %v747, 1.442695
    %v749 = vpow.pop %v748
    %v750 = vadd.f32 %v749, 1.0
    %v751 = vrcp.pop %v750
    %v752 = vmul.f32 1.0, %v751
    %v753 = vtanh.pop %v746
    %v754 = vmul.f32 %v752, %v663
    %756 = vrot.lane.b32.xlu0 %v753, 32
    %v757 = vpop.permute.xlu0 %756
    %v759 = vmul.f32 %v752, %v757
    %761 = vrot.lane.b32.xlu0 %v759, 32
    %v762 = vpop.permute.xlu0 %761
    %v764 = vadd.f32 %v754, %v762
    %v765 = vtanh.pop %v764
    %767 = vrot.lane.b32.xlu0 %v765, 32
    %v768 = vpop.permute.xlu0 %767
    %v770 = vmul.f32 %v752, %v768
    %v771 = vld [vmem:[#allocation2 + $0xc] sm:$0x3]
    %773 = vrot.lane.b32.xlu0 %v770, 64
    %v774 = vpop.permute.xlu0 %773
    %v775 = vsel %vm167, %v774, 0
    %777 = vmatprep.subr.mxu0 0.0
    %778 = vmatpush1.msra.mxu0 %v162
    %779 = vmatprep.subr.mxu0 0.0
    %780 = vmatpush1.msra.mxu0 %v163
    %781 = vmatprep.subr.mxu0 0.0
    %782 = vmatpush1.msra.mxu0 %v164
    %783 = vmatprep.subr.mxu0 0.0
    %784 = vmatpush1.msra.mxu0 %v165
    %785 = vmatprep.subr.mxu0 0.0
    %786 = vmatpush1.msra.mxu0 0.0
    %787 = vmatprep.subr.mxu0 0.0
    %788 = vmatpush1.msra.mxu0 0.0
    %789 = vmatprep.subr.mxu0 0.0
    %790 = vmatpush1.msra.mxu0 0.0
    %791 = vmatprep.subr.mxu0 0.0
    %792 = vmatpush1.msra.mxu0 0.0
    %793 = vmatprep.subr.mxu0 0.0
    %794 = vmatpush1.msra.mxu0 0.0
    %795 = vmatprep.subr.mxu0 0.0
    %796 = vmatpush1.msra.mxu0 0.0
    %797 = vmatprep.subr.mxu0 0.0
    %798 = vmatpush1.msra.mxu0 0.0
    %799 = vmatprep.subr.mxu0 0.0
    %800 = vmatpush1.msra.mxu0 0.0
    %801 = vmatprep.subr.mxu0 0.0
    %802 = vmatpush1.msra.mxu0 0.0
    %803 = vmatprep.subr.mxu0 0.0
    %804 = vmatpush1.msra.mxu0 0.0
    %805 = vmatprep.subr.mxu0 0.0
    %806 = vmatpush1.msra.mxu0 0.0
    %807 = vmatprep.subr.mxu0 0.0
    %808 = vmatpush1.msra.mxu0 0.0
    %809 = vmatprep.subr.mxu0 0.0
    %810 = vmatpush1.msra.mxu0 0.0
    %811 = vmatprep.subr.mxu0 0.0
    %812 = vmatpush1.msra.mxu0 0.0
    %813 = vmatprep.subr.mxu0 0.0
    %814 = vmatpush1.msra.mxu0 0.0
    %815 = vmatprep.subr.mxu0 0.0
    %816 = vmatpush1.msra.mxu0 0.0
    %817 = vmatprep.subr.mxu0 0.0
    %818 = vmatpush1.msra.mxu0 0.0
    %819 = vmatprep.subr.mxu0 0.0
    %820 = vmatpush1.msra.mxu0 0.0
    %821 = vmatprep.subr.mxu0 0.0
    %822 = vmatpush1.msra.mxu0 0.0
    %823 = vmatprep.subr.mxu0 0.0
    %824 = vmatpush1.msra.mxu0 0.0
    %825 = vmatprep.subr.mxu0 0.0
    %826 = vmatpush1.msra.mxu0 0.0
    %827 = vmatprep.subr.mxu0 0.0
    %828 = vmatpush1.msra.mxu0 0.0
    %829 = vmatprep.subr.mxu0 0.0
    %830 = vmatpush1.msra.mxu0 0.0
    %831 = vmatprep.subr.mxu0 0.0
    %832 = vmatpush1.msra.mxu0 0.0
    %833 = vmatprep.subr.mxu0 0.0
    %834 = vmatpush1.msra.mxu0 0.0
    %835 = vmatprep.subr.mxu0 0.0
    %836 = vmatpush1.msra.mxu0 0.0
    %837 = vmatprep.subr.mxu0 0.0
    %838 = vmatpush1.msra.mxu0 0.0
    %839 = vmatprep.subr.mxu0 0.0
    %840 = vmatpush1.msra.mxu0 0.0
    %841 = vmatprep.mubr.f32.mxu0 0.0
    %842 = vmatmul.mubr.f32.gmra.mrb[0].mxu0 %v775
    %v843 = vpop.f32.mrb[0].mxu0
    %v844 = vadd.f32 0.0, %v843
    %v845 = vpop.f32.mrb[0].mxu0
    %846 = vdwg.mxu0
    %v847 = vadd.f32 %v771, %v844
    %v848 = vxor.u32 %v847, 2147483648
    %v849 = vmul.f32 %v848, 1.442695
    %v850 = vpow.pop %v849
    %v851 = vadd.f32 %v850, 1.0
    %v852 = vrcp.pop %v851
    %v853 = vmul.f32 1.0, %v852
    %v854 = vtanh.pop %v847
    %v855 = vmul.f32 %v853, %v764
    %857 = vrot.lane.b32.xlu0 %v854, 32
    %v858 = vpop.permute.xlu0 %857
    %v860 = vmul.f32 %v853, %v858
    %862 = vrot.lane.b32.xlu0 %v860, 32
    %v863 = vpop.permute.xlu0 %862
    %v865 = vadd.f32 %v855, %v863
    %v866 = vtanh.pop %v865
    %868 = vrot.lane.b32.xlu0 %v866, 32
    %v869 = vpop.permute.xlu0 %868
    %v871 = vmul.f32 %v853, %v869
    %v872 = vld [vmem:[#allocation2 + $0xe] sm:$0x3]
    %874 = vrot.lane.b32.xlu0 %v871, 64
    %v875 = vpop.permute.xlu0 %874
    %v876 = vsel %vm167, %v875, 0
    %878 = vmatprep.subr.mxu0 0.0
    %879 = vmatpush1.msra.mxu0 %v162
    %880 = vmatprep.subr.mxu0 0.0
    %881 = vmatpush1.msra.mxu0 %v163
    %882 = vmatprep.subr.mxu0 0.0
    %883 = vmatpush1.msra.mxu0 %v164
    %884 = vmatprep.subr.mxu0 0.0
    %885 = vmatpush1.msra.mxu0 %v165
    %886 = vmatprep.subr.mxu0 0.0
    %887 = vmatpush1.msra.mxu0 0.0
    %888 = vmatprep.subr.mxu0 0.0
    %889 = vmatpush1.msra.mxu0 0.0
    %890 = vmatprep.subr.mxu0 0.0
    %891 = vmatpush1.msra.mxu0 0.0
    %892 = vmatprep.subr.mxu0 0.0
    %893 = vmatpush1.msra.mxu0 0.0
    %894 = vmatprep.subr.mxu0 0.0
    %895 = vmatpush1.msra.mxu0 0.0
    %896 = vmatprep.subr.mxu0 0.0
    %897 = vmatpush1.msra.mxu0 0.0
    %898 = vmatprep.subr.mxu0 0.0
    %899 = vmatpush1.msra.mxu0 0.0
    %900 = vmatprep.subr.mxu0 0.0
    %901 = vmatpush1.msra.mxu0 0.0
    %902 = vmatprep.subr.mxu0 0.0
    %903 = vmatpush1.msra.mxu0 0.0
    %904 = vmatprep.subr.mxu0 0.0
    %905 = vmatpush1.msra.mxu0 0.0
    %906 = vmatprep.subr.mxu0 0.0
    %907 = vmatpush1.msra.mxu0 0.0
    %908 = vmatprep.subr.mxu0 0.0
    %909 = vmatpush1.msra.mxu0 0.0
    %910 = vmatprep.subr.mxu0 0.0
    %911 = vmatpush1.msra.mxu0 0.0
    %912 = vmatprep.subr.mxu0 0.0
    %913 = vmatpush1.msra.mxu0 0.0
    %914 = vmatprep.subr.mxu0 0.0
    %915 = vmatpush1.msra.mxu0 0.0
    %916 = vmatprep.subr.mxu0 0.0
    %917 = vmatpush1.msra.mxu0 0.0
    %918 = vmatprep.subr.mxu0 0.0
    %919 = vmatpush1.msra.mxu0 0.0
    %920 = vmatprep.subr.mxu0 0.0
    %921 = vmatpush1.msra.mxu0 0.0
    %922 = vmatprep.subr.mxu0 0.0
    %923 = vmatpush1.msra.mxu0 0.0
    %924 = vmatprep.subr.mxu0 0.0
    %925 = vmatpush1.msra.mxu0 0.0
    %926 = vmatprep.subr.mxu0 0.0
    %927 = vmatpush1.msra.mxu0 0.0
    %928 = vmatprep.subr.mxu0 0.0
    %929 = vmatpush1.msra.mxu0 0.0
    %930 = vmatprep.subr.mxu0 0.0
    %931 = vmatpush1.msra.mxu0 0.0
    %932 = vmatprep.subr.mxu0 0.0
    %933 = vmatpush1.msra.mxu0 0.0
    %934 = vmatprep.subr.mxu0 0.0
    %935 = vmatpush1.msra.mxu0 0.0
    %936 = vmatprep.subr.mxu0 0.0
    %937 = vmatpush1.msra.mxu0 0.0
    %938 = vmatprep.subr.mxu0 0.0
    %939 = vmatpush1.msra.mxu0 0.0
    %940 = vmatprep.subr.mxu0 0.0
    %941 = vmatpush1.msra.mxu0 0.0
    %942 = vmatprep.mubr.f32.mxu0 0.0
    %943 = vmatmul.mubr.f32.gmra.mrb[0].mxu0 %v876
    %v944 = vpop.f32.mrb[0].mxu0
    %v945 = vadd.f32 0.0, %v944
    %v946 = vpop.f32.mrb[0].mxu0
    %947 = vdwg.mxu0
    %v948 = vadd.f32 %v872, %v945
    %v949 = vxor.u32 %v948, 2147483648
    %v950 = vmul.f32 %v949, 1.442695
    %v951 = vpow.pop %v950
    %v952 = vadd.f32 %v951, 1.0
    %v953 = vrcp.pop %v952
    %v954 = vmul.f32 1.0, %v953
    %v955 = vtanh.pop %v948
    %v956 = vmul.f32 %v954, %v865
    %958 = vrot.lane.b32.xlu0 %v955, 32
    %v959 = vpop.permute.xlu0 %958
    %v961 = vmul.f32 %v954, %v959
    %963 = vrot.lane.b32.xlu0 %v961, 32
    %v964 = vpop.permute.xlu0 %963
    %v966 = vadd.f32 %v956, %v964
    %v967 = vtanh.pop %v966
    %969 = vrot.lane.b32.xlu0 %v967, 32
    %v970 = vpop.permute.xlu0 %969
    %v972 = vmul.f32 %v954, %v970
    %v973 = vxor.u32 %v158, 2147483648
    %v974 = vmul.f32 %v973, 1.442695
    %v975 = vpow.pop %v974
    %v976 = vadd.f32 %v975, 1.0
    %v977 = vrcp.pop %v976
    %v978 = vmul.f32 1.0, %v977
    %v979 = vtanh.pop %v158
    %v980 = vmul.f32 %v978, 0.0
    %982 = vrot.lane.b32.xlu0 %v979, 32
    %v983 = vpop.permute.xlu0 %982
    %v985 = vmul.f32 %v978, %v983
    %987 = vrot.lane.b32.xlu0 %v985, 32
    %v988 = vpop.permute.xlu0 %987
    %v990 = vadd.f32 %v980, %v988
    %v991 = vtanh.pop %v990
    %993 = vrot.lane.b32.xlu0 %v991, 32
    %v994 = vpop.permute.xlu0 %993
    %v996 = vmul.f32 %v978, %v994
    %v998 = vrot.slane %v996, 6
    %v1000 = vadd.f32 %v972, %v998
    %1002 = vrot.lane.b32.xlu0 %v1000, 64
    %v1003 = vpop.permute.xlu0 %1002
    %vm1005 = vcmask 254976
    %1006 = vst.msk [vmem:[#allocation9] sm:$0x3] %vm1005, %v1003
    // Predicated region
    $region30: #{tpu_custom_call.1} parent=1 // pred_check
      _
    $region31: #{tpu_custom_call.1} parent=1 // pred_check_branch
      %1008 = sbr.rel (0) target = $region33
    $region32: #{tpu_custom_call.1} parent=1 // pred_region
      %s1010 = ssub.s32 32, 32
      %1011 = vsyncadd [#allocation5], %s1010
      %s1013 = sshll.u32 [#allocation9], 4
      %s1014 = int_to_ptr.vmem [resolvable:$true] %s1013
      %1016 = dma.vmem_to_hbm [thread:$0]  %s1014, 32, %s4, [#allocation5]
    $region33: #{tpu_custom_call.1} parent=1 // pred_fallthru
      _
    // Predicated region
    $region34: #{tpu_custom_call.1} parent=1 // pred_check
      _
    $region35: #{tpu_custom_call.1} parent=1 // pred_check_branch
      %1018 = sbr.rel (0) target = $region37
    $region36: #{tpu_custom_call.1} parent=1 // pred_region
      %1019 = dma.done [#allocation5], 32
    $region37: #{tpu_custom_call.1} parent=1 // pred_fallthru
      _
    %1020 = vsyncpa [#allocation4], 1
    %1021 = vsyncpa [#allocation7], 1
    %1022 = vsyncpa [#allocation5], 1

</llo_original>
